<compile_context>
chip_gen: v7x
topology: tpu7x:2x2x1
jax: 0.10.0
libtpu: 0.0.40
codegen_flags: <defaults>
</compile_context>

<pallas_src>
import functools

import jax
import jax.numpy as jnp
from jax.experimental import pallas as pl
from jax.experimental.pallas import tpu as pltpu

SMOOTH = 1e-6
_LANE = 128


def _recall_kernel(pred_ref, tgt_ref, tp_ref, tot_ref, *, hw, tile, mask_tail):
    """Grid step (n, s): one batch row, one spatial tile of size `tile`."""
    s = pl.program_id(1)

    @pl.when(s == 0)
    def _():
        tp_ref[...] = jnp.zeros_like(tp_ref)
        tot_ref[...] = jnp.zeros_like(tot_ref)

    logits = pred_ref[...].astype(jnp.float32)               # (1, C, T)

    # Numerically stable softmax over the channel (sublane) axis.
    m = jnp.max(logits, axis=1, keepdims=True)               # (1, 1, T)
    e = jnp.exp(logits - m)
    denom = jnp.sum(e, axis=1, keepdims=True)                # (1, 1, T)
    probs = e * pl.reciprocal(denom, approx=True)            # divide on the EUP

    tgt = tgt_ref[...].astype(jnp.int32)                     # (1, 1, T)
    if mask_tail:
        # Ragged tail: lanes past H*W hold unspecified data.  Force their label to -1
        # so they match no channel (cheap: ~3 ops on a (1,1,T) vector, not (1,C,T)).
        lane = jax.lax.broadcasted_iota(jnp.int32, tgt.shape, 2)
        tgt = jnp.where(s * tile + lane < hw, tgt, -1)

    # One-hot via iota compare (no scatter, no onehot*probs multiply).
    c_iota = jax.lax.broadcasted_iota(jnp.int32, logits.shape, 1)
    mask = c_iota == tgt                                     # (1, C, T) bool

    tp_ref[...] += jnp.sum(jnp.where(mask, probs, 0.0), axis=2, keepdims=True)
    tot_ref[...] += jnp.sum(mask.astype(jnp.float32), axis=2, keepdims=True)


def _choose_tile(hw, c, pred_itemsize):
    """Largest lane-aligned spatial tile whose double-buffered inputs fit the budget."""
    per_elem = 2 * (c * pred_itemsize + 4)      # double-buffered bytes / spatial elem
    budget = 16 * 1024 * 1024                   # inputs budget; limit set to 32 MiB
    tile = budget // per_elem
    tile = min(tile, 128 * 1024)                # cap per-step size
    tile = max(_LANE, (tile // _LANE) * _LANE)
    hw_ceil = -(-hw // _LANE) * _LANE           # don't over-allocate for small inputs
    return min(tile, hw_ceil)


def _weight_reduce_loss(loss, weight=None, reduction="mean", avg_factor=None):
    """Mirrors mmseg's weight_reduce_loss."""
    if weight is not None:
        loss = loss * weight
    if avg_factor is None:
        if reduction == "mean":
            return jnp.mean(loss)
        if reduction == "sum":
            return jnp.sum(loss)
        return loss
    if reduction == "mean":
        return jnp.sum(loss) / avg_factor
    if reduction == "none":
        return loss
    raise ValueError('avg_factor can not be used with reduction="sum"')


@functools.partial(jax.jit, static_argnames=("reduction", "loss_weight"))
def recall_loss(predict, target, weight=None, avg_factor=None,
                class_weight=None, loss_weight=1.0, reduction="mean"):
    """predict: (N, C, H, W) float (f32 or bf16), target: (N, H, W) int -> loss."""
    N, C, H, W = predict.shape
    HW = H * W
    pred = predict.reshape(N, C, HW)
    tgt = target.reshape(N, 1, HW).astype(jnp.int32)

    tile = _choose_tile(HW, C, jnp.dtype(predict.dtype).itemsize)
    num_tiles = pl.cdiv(HW, tile)
    mask_tail = (HW % tile) != 0

    kernel = functools.partial(_recall_kernel, hw=HW, tile=tile, mask_tail=mask_tail)

    tp, tot = pl.pallas_call(
        kernel,
        out_shape=(jax.ShapeDtypeStruct((N, C, 1), jnp.float32),
                   jax.ShapeDtypeStruct((N, C, 1), jnp.float32)),
        grid_spec=pltpu.PrefetchScalarGridSpec(
            num_scalar_prefetch=0,
            grid=(N, num_tiles),
            in_specs=[
                pl.BlockSpec((1, C, tile), lambda n, s: (n, 0, s)),
                pl.BlockSpec((1, 1, tile), lambda n, s: (n, 0, s)),
            ],
            out_specs=[
                pl.BlockSpec((1, C, 1), lambda n, s: (n, 0, 0)),
                pl.BlockSpec((1, C, 1), lambda n, s: (n, 0, 0)),
            ],
        ),
        compiler_params=pltpu.CompilerParams(
            dimension_semantics=("parallel", "arbitrary"),
            vmem_limit_bytes=32 * 1024 * 1024,
        ),
    )(pred, tgt)

    tp = tp[:, :, 0]
    tot = tot[:, :, 0]
    class_wise = (tp + SMOOTH) / (tot + SMOOTH)
    if class_weight is not None:
        class_wise = class_wise * jnp.asarray(class_weight, class_wise.dtype)

    reduced = _weight_reduce_loss(class_wise, weight, reduction, avg_factor)
    return loss_weight * (1.0 - reduced)


def recall_loss_ref(predict, target, class_weight=None, loss_weight=1.0,
                    reduction="mean"):
    """Pure-JAX reference matching the PyTorch forward."""
    C = predict.shape[1]
    probs = jax.nn.softmax(predict.astype(jnp.float32), axis=1)
    onehot = jax.nn.one_hot(target, C, axis=1, dtype=jnp.float32)
    tp = jnp.sum(probs * onehot, axis=(2, 3))
    tot = jnp.sum(onehot, axis=(2, 3))
    cls = (tp + SMOOTH) / (tot + SMOOTH)
    if class_weight is not None:
        cls = cls * class_weight
    if reduction == "mean":
        red = jnp.mean(cls)
    elif reduction == "sum":
        red = jnp.sum(cls)
    else:
        red = cls
    return loss_weight * (1.0 - red)


if __name__ == "__main__":
    key = jax.random.PRNGKey(0)
    k1, k2, k3, k4 = jax.random.split(key, 4)

    # Case 1: 128-aligned spatial size, class weights, mean reduction.
    N, C, H, W = 2, 4, 16, 16
    predict = jax.random.normal(k1, (N, C, H, W), dtype=jnp.float32)
    target = jax.random.randint(k2, (N, H, W), 0, C, dtype=jnp.int32)
    class_weight = jnp.array([0.5, 1.0, 1.5, 2.0], dtype=jnp.float32)

    loss = recall_loss(predict, target, class_weight=class_weight,
                       loss_weight=1.0, reduction="mean")
    loss = jax.block_until_ready(loss)
    ref = recall_loss_ref(predict, target, class_weight=class_weight,
                          loss_weight=1.0, reduction="mean")
    # Tolerance loosened for the EUP approx-reciprocal softmax (~2^-12 relative).
    assert jnp.allclose(loss, ref, rtol=2e-3, atol=2e-3), (loss, ref)

    # Case 2: non-multiple-of-128 spatial size (exercises the in-kernel ragged-tail
    # masking path, no host-side padding), sum reduction, no class weights.
    N2, C2, H2, W2 = 2, 4, 15, 17
    predict2 = jax.random.normal(k3, (N2, C2, H2, W2), dtype=jnp.float32)
    target2 = jax.random.randint(k4, (N2, H2, W2), 0, C2, dtype=jnp.int32)
    loss2 = recall_loss(predict2, target2, reduction="sum")
    loss2 = jax.block_until_ready(loss2)
    ref2 = recall_loss_ref(predict2, target2, reduction="sum")
    assert jnp.allclose(loss2, ref2, rtol=2e-3, atol=2e-3), (loss2, ref2)

    print("KERNEL_OK")
</pallas_src>

<mosaic_0001>
module attributes {stable_mosaic.version = 11 : i64} {
  func.func @_recall_kernel(%arg0: i32, %arg1: i32, %arg2: memref<1x4x256xf32, #tpu.memory_space<vmem>>, %arg3: memref<1x1x256xi32, #tpu.memory_space<vmem>>, %arg4: memref<1x4x1xf32, #tpu.memory_space<vmem>>, %arg5: memref<1x4x1xf32, #tpu.memory_space<vmem>>) attributes {dimension_semantics = [#tpu.dimension_semantics<parallel>, #tpu.dimension_semantics<arbitrary>], iteration_bounds = array<i64: 2, 1>, scalar_prefetch = 0 : i64, scratch_operands = 0 : i64, tpu.core_type = #tpu.core_type<tc>, window_params = [{transform_indices = @transform_0, window_bounds = array<i64: 1, 4, 256>}, {transform_indices = @transform_1, window_bounds = array<i64: 1, 1, 256>}, {transform_indices = @transform_2, window_bounds = array<i64: 1, 4, 1>}, {transform_indices = @transform_3, window_bounds = array<i64: 1, 4, 1>}]} {
    %c0_i32 = arith.constant 0 : i32
    %0 = arith.cmpi eq, %arg1, %c0_i32 : i32
    %1 = arith.extui %0 : i1 to i32
    %c0_i32_0 = arith.constant 0 : i32
    %2 = arith.cmpi ne, %1, %c0_i32_0 : i32
    scf.if %2 {
      %cst_22 = arith.constant 0.000000e+00 : f32
      %32 = vector.broadcast %cst_22 : f32 to vector<1x4x1xf32>
      %c0_23 = arith.constant 0 : index
      %c0_24 = arith.constant 0 : index
      %c0_25 = arith.constant 0 : index
      %33 = vector.load %arg4[%c0_23, %c0_24, %c0_25] : memref<1x4x1xf32, #tpu.memory_space<vmem>>, vector<1x4x1xf32>
      tpu.vector_store %arg4[%c0_23, %c0_24, %c0_25], %32 {strides = array<i32>} : memref<1x4x1xf32, #tpu.memory_space<vmem>>, vector<1x4x1xf32>,
      %cst_26 = arith.constant 0.000000e+00 : f32
      %34 = vector.broadcast %cst_26 : f32 to vector<1x4x1xf32>
      %c0_27 = arith.constant 0 : index
      %c0_28 = arith.constant 0 : index
      %c0_29 = arith.constant 0 : index
      %35 = vector.load %arg5[%c0_27, %c0_28, %c0_29] : memref<1x4x1xf32, #tpu.memory_space<vmem>>, vector<1x4x1xf32>
      tpu.vector_store %arg5[%c0_27, %c0_28, %c0_29], %34 {strides = array<i32>} : memref<1x4x1xf32, #tpu.memory_space<vmem>>, vector<1x4x1xf32>,
    } else {
    }
    %c0 = arith.constant 0 : index
    %c0_1 = arith.constant 0 : index
    %c0_2 = arith.constant 0 : index
    %3 = vector.load %arg2[%c0, %c0_1, %c0_2] : memref<1x4x256xf32, #tpu.memory_space<vmem>>, vector<1x4x256xf32>
    %cst = arith.constant dense<0xFF800000> : vector<1x256xf32>
    %4 = vector.multi_reduction <maximumf>, %3, %cst [1] : vector<1x4x256xf32> to vector<1x256xf32>
    %5 = vector.shape_cast %4 : vector<1x256xf32> to vector<1x1x256xf32>
    %6 = vector.broadcast %5 : vector<1x1x256xf32> to vector<1x4x256xf32>
    %7 = arith.subf %3, %6 : vector<1x4x256xf32>
    %8 = math.exp %7 : vector<1x4x256xf32>
    %cst_3 = arith.constant dense<0.000000e+00> : vector<1x256xf32>
    %9 = vector.multi_reduction <add>, %8, %cst_3 [1] : vector<1x4x256xf32> to vector<1x256xf32>
    %10 = vector.shape_cast %9 : vector<1x256xf32> to vector<1x1x256xf32>
    %11 = tpu.reciprocal %10 {approx = true} : vector<1x1x256xf32> -> vector<1x1x256xf32>
    %12 = vector.broadcast %11 : vector<1x1x256xf32> to vector<1x4x256xf32>
    %13 = arith.mulf %8, %12 : vector<1x4x256xf32>
    %c0_4 = arith.constant 0 : index
    %c0_5 = arith.constant 0 : index
    %c0_6 = arith.constant 0 : index
    %14 = vector.load %arg3[%c0_4, %c0_5, %c0_6] : memref<1x1x256xi32, #tpu.memory_space<vmem>>, vector<1x1x256xi32>
    %15 = tpu.iota {dimensions = array<i32: 1>} : vector<1x4x256xi32>
    %16 = vector.broadcast %14 : vector<1x1x256xi32> to vector<1x4x256xi32>
    %17 = arith.cmpi eq, %15, %16 : vector<1x4x256xi32>
    %c0_7 = arith.constant 0 : index
    %c0_8 = arith.constant 0 : index
    %c0_9 = arith.constant 0 : index
    %18 = vector.load %arg4[%c0_7, %c0_8, %c0_9] : memref<1x4x1xf32, #tpu.memory_space<vmem>>, vector<1x4x1xf32>
    %cst_10 = arith.constant 0.000000e+00 : f32
    %19 = vector.broadcast %cst_10 : f32 to vector<1x4x256xf32>
    %20 = arith.select %17, %13, %19 : vector<1x4x256xi1>, vector<1x4x256xf32>
    %cst_11 = arith.constant dense<0.000000e+00> : vector<1x4xf32>
    %21 = vector.multi_reduction <add>, %20, %cst_11 [2] : vector<1x4x256xf32> to vector<1x4xf32>
    %22 = vector.shape_cast %21 : vector<1x4xf32> to vector<1x4x1xf32>
    %23 = arith.addf %18, %22 : vector<1x4x1xf32>
    %c0_12 = arith.constant 0 : index
    %c0_13 = arith.constant 0 : index
    %c0_14 = arith.constant 0 : index
    %24 = vector.load %arg4[%c0_12, %c0_13, %c0_14] : memref<1x4x1xf32, #tpu.memory_space<vmem>>, vector<1x4x1xf32>
    tpu.vector_store %arg4[%c0_12, %c0_13, %c0_14], %23 {strides = array<i32>} : memref<1x4x1xf32, #tpu.memory_space<vmem>>, vector<1x4x1xf32>,
    %c0_15 = arith.constant 0 : index
    %c0_16 = arith.constant 0 : index
    %c0_17 = arith.constant 0 : index
    %25 = vector.load %arg5[%c0_15, %c0_16, %c0_17] : memref<1x4x1xf32, #tpu.memory_space<vmem>>, vector<1x4x1xf32>
    %26 = arith.extui %17 : vector<1x4x256xi1> to vector<1x4x256xi32>
    %27 = arith.sitofp %26 : vector<1x4x256xi32> to vector<1x4x256xf32>
    %cst_18 = arith.constant dense<0.000000e+00> : vector<1x4xf32>
    %28 = vector.multi_reduction <add>, %27, %cst_18 [2] : vector<1x4x256xf32> to vector<1x4xf32>
    %29 = vector.shape_cast %28 : vector<1x4xf32> to vector<1x4x1xf32>
    %30 = arith.addf %25, %29 : vector<1x4x1xf32>
    %c0_19 = arith.constant 0 : index
    %c0_20 = arith.constant 0 : index
    %c0_21 = arith.constant 0 : index
    %31 = vector.load %arg5[%c0_19, %c0_20, %c0_21] : memref<1x4x1xf32, #tpu.memory_space<vmem>>, vector<1x4x1xf32>
    tpu.vector_store %arg5[%c0_19, %c0_20, %c0_21], %30 {strides = array<i32>} : memref<1x4x1xf32, #tpu.memory_space<vmem>>, vector<1x4x1xf32>,
    return
  }
  func.func @transform_0(%arg0: i32, %arg1: i32) -> (i32, i32, i32) {
    %c0_i32 = arith.constant 0 : i32
    %c0_i32_0 = arith.constant 0 : i32
    return %arg0, %c0_i32, %arg1 : i32, i32, i32
  }
  func.func @transform_1(%arg0: i32, %arg1: i32) -> (i32, i32, i32) {
    %c0_i32 = arith.constant 0 : i32
    %c0_i32_0 = arith.constant 0 : i32
    return %arg0, %c0_i32, %arg1 : i32, i32, i32
  }
  func.func @transform_2(%arg0: i32, %arg1: i32) -> (i32, i32, i32) {
    %c0_i32 = arith.constant 0 : i32
    %c0_i32_0 = arith.constant 0 : i32
    %c0_i32_1 = arith.constant 0 : i32
    return %arg0, %c0_i32, %c0_i32_0 : i32, i32, i32
  }
  func.func @transform_3(%arg0: i32, %arg1: i32) -> (i32, i32, i32) {
    %c0_i32 = arith.constant 0 : i32
    %c0_i32_0 = arith.constant 0 : i32
    %c0_i32_1 = arith.constant 0 : i32
    return %arg0, %c0_i32, %c0_i32_0 : i32, i32, i32
  }
}

</mosaic_0001>

<llo_original>
// kernel: recall_loss.1
$region0: #{recall_loss.1}
  #allocation0 [shape = 'u32[]', space=smem, size = 0x4, offset = 0x4, fixed_abs, tag = 'smem constant byte address 0x4 - core index']
  #allocation1 [shape = 'u32[144,128]{1,0:T(1,128)}', space=vmem, size = 0x12000, scoped, tag = 'internal scratch']
  %s0 = inlined_call_operand.vmem [shape: f32[2,4,256], index: 0, kind: input, shape index: {}]
  %s1 = inlined_call_operand.vmem [shape: s32[2,1,256], index: 1, kind: input, shape index: {}]
  %s2 = inlined_call_operand.vmem [shape: f32[2,4,1], index: 2, kind: output, shape index: {0}]
  %s3 = inlined_call_operand.vmem [shape: f32[2,4,1], index: 3, kind: output, shape index: {1}]
  %4 = xla_tuple %s2, %s3
  %s5 = sld [smem:[#allocation0]]
  $region53: #{recall_loss.1} parent=0
    _
  %s7 = ssub.s32 1, %s5
  %s8 = scalar_select 0, %s7, %s5
  loop: start=0, step=1, limit=4
  $region2: #{recall_loss.1} parent=0 // loop_pre_header
    _
  $region3: #{recall_loss.1} parent=0 // loop_header
    %s10 = sphi 0, %s14
    %p11 = scmp.ge.s32.totalorder %s10, 4
    %s17 = sphi 0, %s29
    %s18 = sphi 0, %s25
    %s19 = sphi 0, %s17
    %s20 = sphi 0, %s18
    %s21 = sphi 0, %s19
    %s22 = sphi 0, %s20
    %s34 = sphi 0, %s36
    %s37 = sphi 0, %s34
    %s38 = sphi 0, %s37
    %s54 = sphi 0, %s38
    %s62 = sphi 0, %s64
    %s65 = sphi 0, %s62
    %s66 = sphi 0, %s65
    %s82 = sphi 0, %s66
    %s88 = sphi 0, %s90
    %s91 = sphi 0, %s88
    %s92 = sphi 0, %s91
    %s108 = sphi 0, %s92
    %s114 = sphi 0, %s116
    %s117 = sphi 0, %s114
    %s118 = sphi 0, %s117
    %s134 = sphi 0, %s118
  $region4: #{recall_loss.1} parent=0 // loop_header_branch
    %13 = sbr.rel (%p11) target = $region8
  $region5: #{recall_loss.1} parent=0 // loop_body
    %s15 = ssub.s32 %s10, 1
    %s16 = ssub.s32 %s10, 2
    %s23 = sadd.s32 1, %s18
    %p24 = scmp.ge.s32.totalorder %s23, 1
    %s25 = scalar_select %p24, 0, %s23
    %s26 = sadd.s32 1, %s17
    %s27 = scalar_select %p24, %s26, %s17
    %p28 = scmp.ge.s32.totalorder %s27, 2
    %s29 = scalar_select %p28, 0, %s27
    %s30 = ssub.s32 %s17, %s29
    %s31 = ssub.s32 %s18, %s25
    %s32 = sor.u32 %s30, %s31
    %p33 = scmp.eq.s32.totalorder %s32, 0
    %s35 = sadd.s32 %s34, 1
    %s36 = scalar_select %p33, %s34, %s35
    %p39 = pneg %p33
    %p40 = scmp.eq.s32.totalorder %s10, 1
    %p41 = por %p39, %p40
    %p42 = scmp.ne.s32.totalorder %s34, %s37
    %p43 = scmp.eq.s32.totalorder %s10, 0
    %p44 = por %p42, %p43
    %p45 = scmp.ne.s32.totalorder %s34, %s37
    %p46 = scmp.eq.s32.totalorder %s15, 1
    %p47 = por %p45, %p46
    %p48 = scmp.ne.s32.totalorder %s37, %s38
    %p49 = scmp.eq.s32.totalorder %s15, 0
    %p50 = por %p48, %p49
    %p51 = scmp.ne.s32.totalorder %s37, %s38
    %p52 = scmp.eq.s32.totalorder %s16, 1
    %p53 = por %p51, %p52
    %p55 = scmp.ne.s32.totalorder %s38, %s54
    %p56 = scmp.eq.s32.totalorder %s16, 0
    %p57 = por %p55, %p56
    %s58 = ssub.s32 %s17, %s29
    %s59 = ssub.s32 %s18, %s25
    %s60 = sor.u32 %s58, %s59
    %p61 = scmp.eq.s32.totalorder %s60, 0
    %s63 = sadd.s32 %s62, 1
    %s64 = scalar_select %p61, %s62, %s63
    %p67 = pneg %p61
    %p68 = scmp.eq.s32.totalorder %s10, 1
    %p69 = por %p67, %p68
    %p70 = scmp.ne.s32.totalorder %s62, %s65
    %p71 = scmp.eq.s32.totalorder %s10, 0
    %p72 = por %p70, %p71
    %p73 = scmp.ne.s32.totalorder %s62, %s65
    %p74 = scmp.eq.s32.totalorder %s15, 1
    %p75 = por %p73, %p74
    %p76 = scmp.ne.s32.totalorder %s65, %s66
    %p77 = scmp.eq.s32.totalorder %s15, 0
    %p78 = por %p76, %p77
    %p79 = scmp.ne.s32.totalorder %s65, %s66
    %p80 = scmp.eq.s32.totalorder %s16, 1
    %p81 = por %p79, %p80
    %p83 = scmp.ne.s32.totalorder %s66, %s82
    %p84 = scmp.eq.s32.totalorder %s16, 0
    %p85 = por %p83, %p84
    %s86 = ssub.s32 %s17, %s29
    %p87 = scmp.eq.s32.totalorder %s86, 0
    %s89 = sadd.s32 %s88, 1
    %s90 = scalar_select %p87, %s88, %s89
    %p93 = pneg %p87
    %p94 = scmp.eq.s32.totalorder %s10, 1
    %p95 = por %p93, %p94
    %p96 = scmp.ne.s32.totalorder %s88, %s91
    %p97 = scmp.eq.s32.totalorder %s10, 0
    %p98 = por %p96, %p97
    %p99 = scmp.ne.s32.totalorder %s88, %s91
    %p100 = scmp.eq.s32.totalorder %s15, 1
    %p101 = por %p99, %p100
    %p102 = scmp.ne.s32.totalorder %s91, %s92
    %p103 = scmp.eq.s32.totalorder %s15, 0
    %p104 = por %p102, %p103
    %p105 = scmp.ne.s32.totalorder %s91, %s92
    %p106 = scmp.eq.s32.totalorder %s16, 1
    %p107 = por %p105, %p106
    %p109 = scmp.ne.s32.totalorder %s92, %s108
    %p110 = scmp.eq.s32.totalorder %s16, 0
    %p111 = por %p109, %p110
    %s112 = ssub.s32 %s17, %s29
    %p113 = scmp.eq.s32.totalorder %s112, 0
    %s115 = sadd.s32 %s114, 1
    %s116 = scalar_select %p113, %s114, %s115
    %p119 = pneg %p113
    %p120 = scmp.eq.s32.totalorder %s10, 1
    %p121 = por %p119, %p120
    %p122 = scmp.ne.s32.totalorder %s114, %s117
    %p123 = scmp.eq.s32.totalorder %s10, 0
    %p124 = por %p122, %p123
    %p125 = scmp.ne.s32.totalorder %s114, %s117
    %p126 = scmp.eq.s32.totalorder %s15, 1
    %p127 = por %p125, %p126
    %p128 = scmp.ne.s32.totalorder %s117, %s118
    %p129 = scmp.eq.s32.totalorder %s15, 0
    %p130 = por %p128, %p129
    %p131 = scmp.ne.s32.totalorder %s117, %s118
    %p132 = scmp.eq.s32.totalorder %s16, 1
    %p133 = por %p131, %p132
    %p135 = scmp.ne.s32.totalorder %s118, %s134
    %p136 = scmp.eq.s32.totalorder %s16, 0
    %p137 = por %p135, %p136
    %p138 = scmp.le.s32.totalorder 1, %s10
    %p139 = scmp.lt.s32.totalorder %s10, 3
    %p140 = pnand %p138, %p139
    %p141 = pneg %p140
    // Predicated region
    $region9: #{recall_loss.1} parent=5 // pred_check
      _
    $region10: #{recall_loss.1} parent=5 // pred_check_branch
      %143 = sbr.rel (%p140) target = $region12
    $region11: #{recall_loss.1} parent=5 // pred_region
      %s144 = ssub.s32 %s10, 1
    $region12: #{recall_loss.1} parent=5 // pred_fallthru
      _
    %p145 = scmp.lt.s32.totalorder %s10, 2
    // Predicated region
    $region13: #{recall_loss.1} parent=5 // pred_check
      %p146 = pneg %p145
    $region14: #{recall_loss.1} parent=5 // pred_check_branch
      %148 = sbr.rel (%p146) target = $region16
    $region15: #{recall_loss.1} parent=5 // pred_region
      // Predicated region
      $region17: #{recall_loss.1} parent=15 // pred_check
        %p149 = pneg %p44
      $region18: #{recall_loss.1} parent=15 // pred_check_branch
        %151 = sbr.rel (%p149) target = $region20
      $region19: #{recall_loss.1} parent=15 // pred_region
        %s152 = smul.u32 2, %s18
        %p153 = scmp.lt.s32.totalorder %s17, 1
        %s154 = scalar_select %p153, %s17, 1
        %p155 = scmp.lt.s32.totalorder %s152, 1
        %s156 = scalar_select %p155, %s152, 1
        %s157 = smul.addr %s154, 2
        %s158 = sadd.s32 %s156, %s157
        %s159 = smul.addr %s158, 4
        %s160 = scalar_lea.vmem %s0, %s159
        %s161 = smul.u32 2, %s18
      $region20: #{recall_loss.1} parent=15 // pred_fallthru
        _
      // Predicated region
      $region21: #{recall_loss.1} parent=15 // pred_check
        %p162 = pneg %p72
      $region22: #{recall_loss.1} parent=15 // pred_check_branch
        %164 = sbr.rel (%p162) target = $region24
      $region23: #{recall_loss.1} parent=15 // pred_region
        %s165 = smul.u32 2, %s18
        %p166 = scmp.lt.s32.totalorder %s17, 1
        %s167 = scalar_select %p166, %s17, 1
        %p168 = scmp.lt.s32.totalorder %s165, 1
        %s169 = scalar_select %p168, %s165, 1
        %s170 = smul.addr %s167, 2
        %s171 = sadd.s32 %s169, %s170
        %s172 = scalar_lea.vmem %s1, %s171
        %s173 = smul.u32 2, %s18
      $region24: #{recall_loss.1} parent=15 // pred_fallthru
        _
    $region16: #{recall_loss.1} parent=5 // pred_fallthru
      _
    %p174 = scmp.le.s32.totalorder 1, %s10
    %p175 = scmp.lt.s32.totalorder %s10, 3
    %p176 = pnand %p174, %p175
    %p177 = pneg %p176
    // Predicated region
    $region25: #{recall_loss.1} parent=5 // pred_check
      _
    $region26: #{recall_loss.1} parent=5 // pred_check_branch
      %179 = sbr.rel (%p176) target = $region28
    $region27: #{recall_loss.1} parent=5 // pred_region
      %s180 = ssub.s32 %s10, 1
      %s181 = smul.u32 2, %s20
      %p182 = scmp.lt.s32.totalorder %s19, 1
      %s183 = scalar_select %p182, %s19, 1
      %p184 = scmp.lt.s32.totalorder %s181, 1
      %s185 = scalar_select %p184, %s181, 1
      %s186 = smul.addr %s183, 2
      %s187 = sadd.s32 %s185, %s186
      %s188 = smul.addr %s187, 4
      %s189 = scalar_lea.vmem %s0, %s188
      %p190 = pneg %p50
      %p191 = pneg %p47
      %s192 = smul.u32 2, %s20
      %p193 = scmp.lt.s32.totalorder %s19, 1
      %s194 = scalar_select %p193, %s19, 1
      %p195 = scmp.lt.s32.totalorder %s192, 1
      %s196 = scalar_select %p195, %s192, 1
      %s197 = smul.addr %s194, 2
      %s198 = sadd.s32 %s196, %s197
      %s199 = scalar_lea.vmem %s1, %s198
      %p200 = pneg %p78
      %p201 = pneg %p75
      %p202 = pneg %p104
      %p203 = pneg %p101
      %p204 = scmp.lt.s32.totalorder %s19, 1
      %s205 = scalar_select %p204, %s19, 1
      %s206 = smul.addr %s205, 4
      %s207 = scalar_lea.vmem %s2, %s206
      %p208 = pneg %p130
      %p209 = pneg %p127
      %p210 = scmp.lt.s32.totalorder %s19, 1
      %s211 = scalar_select %p210, %s19, 1
      %s212 = smul.addr %s211, 4
      %s213 = scalar_lea.vmem %s3, %s212
      %s214 = smul.u32 2, %s20
      %p215 = scmp.lt.s32.totalorder %s19, 1
      %s216 = scalar_select %p215, %s19, 1
      %p217 = scmp.lt.s32.totalorder %s214, 1
      %s218 = scalar_select %p217, %s214, 1
      %s219 = smul.addr %s216, 2
      %s220 = sadd.s32 %s218, %s219
      %s221 = smul.addr %s220, 4
      %s222 = scalar_lea.vmem %s0, %s221
      %s223 = smul.u32 2, %s20
      %s224 = smul.u32 2, %s20
      %p225 = scmp.lt.s32.totalorder %s19, 1
      %s226 = scalar_select %p225, %s19, 1
      %p227 = scmp.lt.s32.totalorder %s224, 1
      %s228 = scalar_select %p227, %s224, 1
      %s229 = smul.addr %s226, 2
      %s230 = sadd.s32 %s228, %s229
      %s231 = scalar_lea.vmem %s1, %s230
      %s232 = smul.u32 2, %s20
      %p233 = scmp.lt.s32.totalorder %s19, 1
      %s234 = scalar_select %p233, %s19, 1
      %s235 = smul.addr %s234, 4
      %s236 = scalar_lea.vmem %s2, %s235
      %p237 = scmp.lt.s32.totalorder %s19, 1
      %s238 = scalar_select %p237, %s19, 1
      %s239 = smul.addr %s238, 4
      %s240 = scalar_lea.vmem %s3, %s239
      %p241 = scmp.eq.s32.totalorder %s20, 0
      // Predicated region
      $region29: #{recall_loss.1} parent=27 // pred_check
        %p242 = pneg %p241
      $region30: #{recall_loss.1} parent=27 // pred_check_branch
        %244 = sbr.rel (%p242) target = $region32
      $region31: #{recall_loss.1} parent=27 // pred_region
        %vm245 = vcmask 3072
        %246 = vst.msk [vmem:[%s236] sm:$0xf] %vm245, 0.0
        %247 = vst.msk [vmem:[%s240] sm:$0xf] %vm245, 0.0
      $region32: #{recall_loss.1} parent=27 // pred_fallthru
        _
      %v248 = vld [vmem:[%s222] sm:$0xff]
      %v250 = vcombine.high %v248, %v248
      %vm252 = vcmask 1043456
      %v253 = vsel %vm252, %v248, -inf
      %v254 = vrot.slane %v253, 4
      %v255 = vmax.f32 %v253, %v254
      %v256 = vrot.slane %v255, 2
      %v257 = vmax.f32 %v255, %v256
      %v258 = vrot.slane %v257, 1
      %v259 = vmax.f32 %v257, %v258
      %v260 = vsel %vm252, %v250, -inf
      %v261 = vrot.slane %v260, 4
      %v262 = vmax.f32 %v260, %v261
      %v263 = vrot.slane %v262, 2
      %v264 = vmax.f32 %v262, %v263
      %v265 = vrot.slane %v264, 1
      %v266 = vmax.f32 %v264, %v265
      %v269 = vcombine.low %v259, %v266
      %v271 = vsub.f32 %v248, %v269
      %v272 = vmul.f32 %v271, 1.442695
      %v273 = vpow.pop %v272
      %v275 = vcombine.high %v273, %v273
      %v277 = vsel %vm252, %v273, 0.0
      %v278 = vrot.slane %v277, 4
      %v279 = vadd.f32 %v277, %v278
      %v280 = vrot.slane %v279, 2
      %v281 = vadd.f32 %v279, %v280
      %v282 = vrot.slane %v281, 1
      %v283 = vadd.f32 %v281, %v282
      %v284 = vsel %vm252, %v275, 0.0
      %v285 = vrot.slane %v284, 4
      %v286 = vadd.f32 %v284, %v285
      %v287 = vrot.slane %v286, 2
      %v288 = vadd.f32 %v286, %v287
      %v289 = vrot.slane %v288, 1
      %v290 = vadd.f32 %v288, %v289
      %v291 = vrcp.pop %v283
      %v292 = vrcp.pop %v290
      %v295 = vcombine.low %v291, %v292
      %v297 = vmul.f32 %v273, %v295
      %v298 = vld [vmem:[%s231] sm:$0x3]
      %v299 = vlaneseq
      %v300 = vshrl.u32 %v299, 7
      %v301 = vlaneseq
      %v302 = vshrl.u32 %v301, 7
      %v303 = vsub.s32 0, %v302
      %v304 = vrot.slane %v298, %v303
      %v305 = vlaneseq
      %v306 = vshrl.u32 %v305, 7
      %v307 = vsub.s32 1, %v306
      %v308 = vrot.slane %v298, %v307
      %vm309 = vcmp.eq.s32.totalorder %v300, %v304
      %vm310 = vcmp.eq.s32.totalorder %v300, %v308
      %v311 = vld [vmem:[%s236] sm:$0xf]
      %v313 = vcombine.high %v297, %v297
      %v315 = vsel %vm309, %v297, 0.0
      %v316 = vsel %vm310, %v313, 0.0
      %v317 = vsel %vm252, %v315, 0.0
      %v318 = vsel %vm252, %v316, 0.0
      %v319 = vadd.f32 %v317, %v318
      %320 = vadd.xlane.f32.xlu0 %v319
      %v321 = vpop.xlane.xlu0 %320
      %v322 = vadd.f32 %v311, %v321
      %vm323 = vcmask 3072
      %324 = vst.msk [vmem:[%s236] sm:$0xf] %vm323, %v322
      %v325 = vld [vmem:[%s240] sm:$0xf]
      %v326 = vsel %vm309, 1, 0
      %v327 = vsel %vm310, 1, 0
      %v328 = vcvt.s32.f32 %v326
      %v329 = vcvt.s32.f32 %v327
      %v330 = vsel %vm252, %v328, 0.0
      %v331 = vsel %vm252, %v329, 0.0
      %v332 = vadd.f32 %v330, %v331
      %333 = vadd.xlane.f32.xlu0 %v332
      %v334 = vpop.xlane.xlu0 %333
      %v335 = vadd.f32 %v325, %v334
      %336 = vst.msk [vmem:[%s240] sm:$0xf] %vm323, %v335
      %p337 = scmp.lt.s32.totalorder %s19, 1
      %s338 = scalar_select %p337, %s19, 1
      %s339 = smul.addr %s338, 4
      %s340 = scalar_lea.vmem %s2, %s339
      %p341 = scmp.lt.s32.totalorder %s19, 1
      %s342 = scalar_select %p341, %s19, 1
      %s343 = smul.addr %s342, 4
      %s344 = scalar_lea.vmem %s3, %s343
      // Predicated region
      $region33: #{recall_loss.1} parent=27 // pred_check
        %p345 = pneg %p101
      $region34: #{recall_loss.1} parent=27 // pred_check_branch
        %347 = sbr.rel (%p345) target = $region36
      $region35: #{recall_loss.1} parent=27 // pred_region
        _
      $region36: #{recall_loss.1} parent=27 // pred_fallthru
        _
      // Predicated region
      $region37: #{recall_loss.1} parent=27 // pred_check
        %p348 = pneg %p127
      $region38: #{recall_loss.1} parent=27 // pred_check_branch
        %350 = sbr.rel (%p348) target = $region40
      $region39: #{recall_loss.1} parent=27 // pred_region
        _
      $region40: #{recall_loss.1} parent=27 // pred_fallthru
        _
    $region28: #{recall_loss.1} parent=5 // pred_fallthru
      _
    %p351 = scmp.le.s32.totalorder 2, %s10
    // Predicated region
    $region41: #{recall_loss.1} parent=5 // pred_check
      %p352 = pneg %p351
    $region42: #{recall_loss.1} parent=5 // pred_check_branch
      %354 = sbr.rel (%p352) target = $region44
    $region43: #{recall_loss.1} parent=5 // pred_region
      %s355 = ssub.s32 %s10, 2
      // Predicated region
      $region45: #{recall_loss.1} parent=43 // pred_check
        %p356 = pneg %p107
      $region46: #{recall_loss.1} parent=43 // pred_check_branch
        %358 = sbr.rel (%p356) target = $region48
      $region47: #{recall_loss.1} parent=43 // pred_region
        %p359 = scmp.lt.s32.totalorder %s21, 1
        %s360 = scalar_select %p359, %s21, 1
        %s361 = smul.addr %s360, 4
        %s362 = scalar_lea.vmem %s2, %s361
      $region48: #{recall_loss.1} parent=43 // pred_fallthru
        _
      // Predicated region
      $region49: #{recall_loss.1} parent=43 // pred_check
        %p363 = pneg %p133
      $region50: #{recall_loss.1} parent=43 // pred_check_branch
        %365 = sbr.rel (%p363) target = $region52
      $region51: #{recall_loss.1} parent=43 // pred_region
        %p366 = scmp.lt.s32.totalorder %s21, 1
        %s367 = scalar_select %p366, %s21, 1
        %s368 = smul.addr %s367, 4
        %s369 = scalar_lea.vmem %s3, %s368
      $region52: #{recall_loss.1} parent=43 // pred_fallthru
        _
    $region44: #{recall_loss.1} parent=5 // pred_fallthru
      _
  $region6: #{recall_loss.1} parent=0 // loop_footer
    %s14 = sadd.s32 1, %s10
  $region7: #{recall_loss.1} parent=0 // loop_footer_branch
    %9 = sbr.rel target = $region3
  $region8: #{recall_loss.1} parent=0 // loop_exit
    _

</llo_original>
